<compile_context>
chip_gen: v7x
topology: tpu7x:2x2x1
jax: 0.10.0
libtpu: 0.0.40
codegen_flags: <defaults>
</compile_context>

<pallas_src>
import jax
import jax.numpy as jnp
from jax.experimental import pallas as pl
from jax.experimental.pallas import tpu as pltpu

LANE = 128
SUBLANE = 8


def _round_up(n, m):
    return -(-n // m) * m


def _cdiv(a, b):
    return -(-a // b)


def _policy_mlp_kernel(x_ref, w1_ref, b1_ref, w2_ref, b2_ref, o_ref):
    # Cast activations to the matmul dtype in-register (no HBM round trip).
    x = x_ref[...].astype(w1_ref.dtype)
    # Layer 1 on the MXU with f32 accumulation; bias + ReLU in f32 on the VPU.
    h = jnp.dot(x, w1_ref[...], preferred_element_type=jnp.float32)
    h = jnp.maximum(h + b1_ref[...], 0.0)                 # b1: (1, H_pad) broadcasts
    # Layer 2: bf16 (or f32) MXU inputs, f32 accumulate, f32 bias add.
    out = jnp.dot(h.astype(w2_ref.dtype), w2_ref[...],
                  preferred_element_type=jnp.float32)
    o_ref[...] = (out + b2_ref[...]).astype(o_ref.dtype)  # b2: (1, A), A unpadded


def prepare_policy_params(w1, b1, w2, b2, *, compute_dtype=jnp.bfloat16):
    """One-time padding/casting of parameters (hoisted out of the hot path).

    w1: [S, H], b1: [H] or [1, H], w2: [H, A], b2: [A] or [1, A]
    (weights stored transposed relative to nn.Linear.weight).
    Only the hidden axis is zero-padded to a lane multiple; zero padding is
    numerically exact (ReLU(0)=0, zero W2 rows contribute nothing)."""
    S, H = w1.shape
    A = w2.shape[1]
    H_pad = _round_up(H, LANE)
    w1_p = jnp.zeros((S, H_pad), compute_dtype).at[:, :H].set(w1.astype(compute_dtype))
    b1_p = jnp.zeros((1, H_pad), jnp.float32).at[:, :H].set(
        jnp.reshape(b1, (1, H)).astype(jnp.float32))
    w2_p = jnp.zeros((H_pad, A), compute_dtype).at[:H, :].set(w2.astype(compute_dtype))
    b2_p = jnp.reshape(b2, (1, A)).astype(jnp.float32)
    return w1_p, b1_p, w2_p, b2_p


def _choose_batch_tiling(B, max_tile_b):
    """Pad batch only to the sublane multiple; keep >=2 grid steps when possible
    so the 'parallel' batch axis actually uses both v7x TensorCores."""
    B_sub = _round_up(B, SUBLANE)
    if B_sub <= max_tile_b:
        n_tiles = 2 if B_sub >= 2 * SUBLANE else 1
    else:
        n_tiles = _cdiv(B_sub, max_tile_b)
    tile_b = _round_up(_cdiv(B_sub, n_tiles), SUBLANE)
    return tile_b * n_tiles, tile_b, n_tiles


def policy_net_forward(x, w1_p, b1_p, w2_p, b2_p, *, max_tile_b=2048):
    """x: [B, S]; prepared params from prepare_policy_params.
    Returns float32 logits [B, A] = ReLU(x @ W1 + b1) @ W2 + b2."""
    B, S = x.shape
    H_pad = w1_p.shape[1]
    A = w2_p.shape[1]

    B_pad, tile_b, n_tiles = _choose_batch_tiling(B, max_tile_b)
    if B_pad != B:
        # Batch axis only; padded rows are sliced off below.
        x = jnp.pad(x, ((0, B_pad - B), (0, 0)))

    nbytes = lambda a: a.size * a.dtype.itemsize
    cost = pl.CostEstimate(
        flops=2 * B_pad * (S * H_pad + H_pad * A),
        transcendentals=0,
        bytes_accessed=(nbytes(x) + nbytes(w1_p) + nbytes(b1_p)
                        + nbytes(w2_p) + nbytes(b2_p) + B_pad * A * 4),
    )

    out = pl.pallas_call(
        _policy_mlp_kernel,
        out_shape=jax.ShapeDtypeStruct((B_pad, A), jnp.float32),
        grid=(n_tiles,),
        in_specs=[
            pl.BlockSpec((tile_b, S), lambda i: (i, 0)),     # x tile, pipelined over batch
            pl.BlockSpec((S, H_pad), lambda i: (0, 0)),      # weights/biases: constant block
            pl.BlockSpec((1, H_pad), lambda i: (0, 0)),      # index -> fetched once,
            pl.BlockSpec((H_pad, A), lambda i: (0, 0)),      # stay VMEM-resident
            pl.BlockSpec((1, A), lambda i: (0, 0)),          # across the whole grid
        ],
        out_specs=pl.BlockSpec((tile_b, A), lambda i: (i, 0)),  # A = full last dim (legal)
        compiler_params=pltpu.CompilerParams(
            dimension_semantics=("parallel",),               # megacore-shard batch on v7x
        ),
        cost_estimate=cost,
    )(x, w1_p, b1_p, w2_p, b2_p)

    return out if B_pad == B else out[:B]


def init_policy_net_params(key, state_dim, actions_dim, hidden_dim=64,
                           dtype=jnp.float32):
    """Init mimicking nn.Linear's U(-1/sqrt(fan_in), 1/sqrt(fan_in)).
    Weights are stored transposed relative to PyTorch: [in, out]."""
    k1, k2, k3, k4 = jax.random.split(key, 4)
    bound1 = 1.0 / (state_dim ** 0.5)
    bound2 = 1.0 / (hidden_dim ** 0.5)
    w1 = jax.random.uniform(k1, (state_dim, hidden_dim), dtype, -bound1, bound1)
    b1 = jax.random.uniform(k2, (1, hidden_dim), dtype, -bound1, bound1)
    w2 = jax.random.uniform(k3, (hidden_dim, actions_dim), dtype, -bound2, bound2)
    b2 = jax.random.uniform(k4, (1, actions_dim), dtype, -bound2, bound2)
    return w1, b1, w2, b2


if __name__ == "__main__":
    batch = 8
    state_dim = 16
    actions_dim = 8
    hidden_dim = 64

    key = jax.random.PRNGKey(0)
    k_params, k_x, k_x2 = jax.random.split(key, 3)

    w1, b1, w2, b2 = init_policy_net_params(
        k_params, state_dim, actions_dim, hidden_dim)
    x = jax.random.normal(k_x, (batch, state_dim), jnp.float32)

    # Pure-JAX reference of the forward semantics.
    ref = jnp.maximum(x @ w1 + b1, 0.0) @ w2 + b2

    # Params prepared ONCE (outside the hot path); forward is jitted.
    fwd = jax.jit(policy_net_forward)

    # Full-precision path (f32 matmul inputs) -> tight tolerance.
    p_f32 = prepare_policy_params(w1, b1, w2, b2, compute_dtype=jnp.float32)
    out_f32 = jax.block_until_ready(fwd(x, *p_f32))
    assert out_f32.shape == (batch, actions_dim)
    assert jnp.allclose(out_f32, ref, atol=1e-4, rtol=1e-4)

    # bf16 MXU fast path (v6e/v7x), f32 accumulate/elementwise -> loose tolerance.
    p_bf16 = prepare_policy_params(w1, b1, w2, b2, compute_dtype=jnp.bfloat16)
    out_bf16 = jax.block_until_ready(fwd(x, *p_bf16))
    assert out_bf16.shape == (batch, actions_dim)
    assert jnp.allclose(out_bf16, ref, atol=5e-2, rtol=5e-2)

    # Ragged batch exercises the batch-pad path and the 2-tile grid.
    batch2 = 100
    x2 = jax.random.normal(k_x2, (batch2, state_dim), jnp.float32)
    ref2 = jnp.maximum(x2 @ w1 + b1, 0.0) @ w2 + b2
    out2 = jax.block_until_ready(fwd(x2, *p_f32))
    assert out2.shape == (batch2, actions_dim)
    assert jnp.allclose(out2, ref2, atol=1e-4, rtol=1e-4)

    print("KERNEL_OK")
</pallas_src>

<mosaic_0001>
module attributes {stable_mosaic.version = 11 : i64} {
  func.func @_policy_mlp_kernel(%arg0: i32, %arg1: memref<8x16xf32, #tpu.memory_space<vmem>>, %arg2: memref<16x128xf32, #tpu.memory_space<vmem>>, %arg3: memref<1x128xf32, #tpu.memory_space<vmem>>, %arg4: memref<128x8xf32, #tpu.memory_space<vmem>>, %arg5: memref<1x8xf32, #tpu.memory_space<vmem>>, %arg6: memref<8x8xf32, #tpu.memory_space<vmem>>) attributes {dimension_semantics = [#tpu.dimension_semantics<parallel>], iteration_bounds = array<i64: 1>, scalar_prefetch = 0 : i64, scratch_operands = 0 : i64, tpu.core_type = #tpu.core_type<tc>, window_params = [{transform_indices = @transform_0, window_bounds = array<i64: 8, 16>}, {pipeline_mode = #tpu.pipeline_mode<synchronous>, transform_indices = @transform_1, window_bounds = array<i64: 16, 128>}, {pipeline_mode = #tpu.pipeline_mode<synchronous>, transform_indices = @transform_2, window_bounds = array<i64: 1, 128>}, {pipeline_mode = #tpu.pipeline_mode<synchronous>, transform_indices = @transform_3, window_bounds = array<i64: 128, 8>}, {pipeline_mode = #tpu.pipeline_mode<synchronous>, transform_indices = @transform_4, window_bounds = array<i64: 1, 8>}, {transform_indices = @transform_5, window_bounds = array<i64: 8, 8>}]} {
    %c0 = arith.constant 0 : index
    %c0_0 = arith.constant 0 : index
    %0 = vector.load %arg1[%c0, %c0_0] : memref<8x16xf32, #tpu.memory_space<vmem>>, vector<8x16xf32>
    %c0_1 = arith.constant 0 : index
    %c0_2 = arith.constant 0 : index
    %1 = vector.load %arg2[%c0_1, %c0_2] : memref<16x128xf32, #tpu.memory_space<vmem>>, vector<16x128xf32>
    %cst = arith.constant dense<0.000000e+00> : vector<8x128xf32>
    %2 = tpu.matmul %0, %1, %cst {dimension_numbers = #tpu.dot_dimension_numbers<[1], [0], [0], [1], [0, 0, 1, 1], [], []>} : vector<8x16xf32>, vector<16x128xf32>, vector<8x128xf32> -> vector<8x128xf32>
    %c0_3 = arith.constant 0 : index
    %c0_4 = arith.constant 0 : index
    %3 = vector.load %arg3[%c0_3, %c0_4] : memref<1x128xf32, #tpu.memory_space<vmem>>, vector<1x128xf32>
    %4 = vector.broadcast %3 : vector<1x128xf32> to vector<8x128xf32>
    %5 = arith.addf %2, %4 : vector<8x128xf32>
    %cst_5 = arith.constant 0.000000e+00 : f32
    %6 = vector.broadcast %cst_5 : f32 to vector<8x128xf32>
    %7 = arith.maximumf %5, %6 : vector<8x128xf32>
    %c0_6 = arith.constant 0 : index
    %c0_7 = arith.constant 0 : index
    %8 = vector.load %arg4[%c0_6, %c0_7] : memref<128x8xf32, #tpu.memory_space<vmem>>, vector<128x8xf32>
    %cst_8 = arith.constant dense<0.000000e+00> : vector<8x8xf32>
    %9 = tpu.matmul %7, %8, %cst_8 {dimension_numbers = #tpu.dot_dimension_numbers<[1], [0], [0], [1], [0, 0, 1, 1], [], []>} : vector<8x128xf32>, vector<128x8xf32>, vector<8x8xf32> -> vector<8x8xf32>
    %c0_9 = arith.constant 0 : index
    %c0_10 = arith.constant 0 : index
    %10 = vector.load %arg5[%c0_9, %c0_10] : memref<1x8xf32, #tpu.memory_space<vmem>>, vector<1x8xf32>
    %11 = vector.broadcast %10 : vector<1x8xf32> to vector<8x8xf32>
    %12 = arith.addf %9, %11 : vector<8x8xf32>
    %c0_11 = arith.constant 0 : index
    %c0_12 = arith.constant 0 : index
    %13 = vector.load %arg6[%c0_11, %c0_12] : memref<8x8xf32, #tpu.memory_space<vmem>>, vector<8x8xf32>
    tpu.vector_store %arg6[%c0_11, %c0_12], %12 {strides = array<i32>} : memref<8x8xf32, #tpu.memory_space<vmem>>, vector<8x8xf32>,
    return
  }
  func.func @transform_0(%arg0: i32) -> (i32, i32) {
    %c0_i32 = arith.constant 0 : i32
    %c0_i32_0 = arith.constant 0 : i32
    return %arg0, %c0_i32 : i32, i32
  }
  func.func @transform_1(%arg0: i32) -> (i32, i32) {
    %c0_i32 = arith.constant 0 : i32
    %c0_i32_0 = arith.constant 0 : i32
    %c0_i32_1 = arith.constant 0 : i32
    return %c0_i32, %c0_i32_0 : i32, i32
  }
  func.func @transform_2(%arg0: i32) -> (i32, i32) {
    %c0_i32 = arith.constant 0 : i32
    %c0_i32_0 = arith.constant 0 : i32
    %c0_i32_1 = arith.constant 0 : i32
    return %c0_i32, %c0_i32_0 : i32, i32
  }
  func.func @transform_3(%arg0: i32) -> (i32, i32) {
    %c0_i32 = arith.constant 0 : i32
    %c0_i32_0 = arith.constant 0 : i32
    %c0_i32_1 = arith.constant 0 : i32
    return %c0_i32, %c0_i32_0 : i32, i32
  }
  func.func @transform_4(%arg0: i32) -> (i32, i32) {
    %c0_i32 = arith.constant 0 : i32
    %c0_i32_0 = arith.constant 0 : i32
    %c0_i32_1 = arith.constant 0 : i32
    return %c0_i32, %c0_i32_0 : i32, i32
  }
  func.func @transform_5(%arg0: i32) -> (i32, i32) {
    %c0_i32 = arith.constant 0 : i32
    %c0_i32_0 = arith.constant 0 : i32
    return %arg0, %c0_i32 : i32, i32
  }
}

</mosaic_0001>

<llo_original>
// kernel: policy_net_forward.1
$region0: #{policy_net_forward.1}
  #allocation0 [shape = 'u32[]', space=smem, size = 0x4, offset = 0x4, fixed_abs, tag = 'smem constant byte address 0x4 - core index']
  #allocation1 [shape = 'u32[144,128]{1,0:T(1,128)}', space=vmem, size = 0x12000, scoped, tag = 'internal scratch']
  %s0 = inlined_call_operand.vmem [shape: f32[8,16], index: 0, kind: input, shape index: {}]
  %s1 = inlined_call_operand.vmem [shape: f32[16,128], index: 1, kind: input, shape index: {}]
  %s2 = inlined_call_operand.vmem [shape: f32[1,128], index: 2, kind: input, shape index: {}]
  %s3 = inlined_call_operand.vmem [shape: f32[128,8], index: 3, kind: input, shape index: {}]
  %s4 = inlined_call_operand.vmem [shape: f32[1,8], index: 4, kind: input, shape index: {}]
  %s5 = inlined_call_operand.hbm [shape: f32[8,8], index: 5, kind: output, shape index: {}]
  %s6 = sld [smem:[#allocation0]]
  $region30: #{policy_net_forward.1} parent=0
    _
  %s8 = ssub.s32 1, %s6
  %s9 = scalar_select 0, %s8, %s6
  $region1: #{policy_net_forward.1} parent=0
    #allocation2 [shape = 'u8[4096]{0}', space=vmem, size = 0x1000, scoped, tag = 'output window, operand 0, single buffered']
    #allocation3 [shape = 's32[1]{0}', space=sflag, size = 0x4, scoped, tag = 'scoped memory for policy_net_forward.1']
    %10 = vsyncpa [#allocation3], 0
    // Predicated region
    $region2: #{policy_net_forward.1} parent=1 // pred_check
      _
    $region3: #{policy_net_forward.1} parent=1 // pred_check_branch
      %12 = sbr.rel (0) target = $region5
    $region4: #{policy_net_forward.1} parent=1 // pred_region
      _
    $region5: #{policy_net_forward.1} parent=1 // pred_fallthru
      _
    // Predicated region
    $region6: #{policy_net_forward.1} parent=1 // pred_check
      _
    $region7: #{policy_net_forward.1} parent=1 // pred_check_branch
      %14 = sbr.rel (0) target = $region9
    $region8: #{policy_net_forward.1} parent=1 // pred_region
      _
    $region9: #{policy_net_forward.1} parent=1 // pred_fallthru
      _
    // Predicated region
    $region10: #{policy_net_forward.1} parent=1 // pred_check
      _
    $region11: #{policy_net_forward.1} parent=1 // pred_check_branch
      %16 = sbr.rel (0) target = $region13
    $region12: #{policy_net_forward.1} parent=1 // pred_region
      _
    $region13: #{policy_net_forward.1} parent=1 // pred_fallthru
      _
    // Predicated region
    $region14: #{policy_net_forward.1} parent=1 // pred_check
      _
    $region15: #{policy_net_forward.1} parent=1 // pred_check_branch
      %18 = sbr.rel (0) target = $region17
    $region16: #{policy_net_forward.1} parent=1 // pred_region
      _
    $region17: #{policy_net_forward.1} parent=1 // pred_fallthru
      _
    // Predicated region
    $region18: #{policy_net_forward.1} parent=1 // pred_check
      _
    $region19: #{policy_net_forward.1} parent=1 // pred_check_branch
      %20 = sbr.rel (0) target = $region21
    $region20: #{policy_net_forward.1} parent=1 // pred_region
      _
    $region21: #{policy_net_forward.1} parent=1 // pred_fallthru
      _
    %v21 = vld [vmem:[%s0] sm:$0xff]
    %v22 = vld [vmem:[%s1] sm:$0xff]
    %v23 = vld [vmem:[%s1 + $0x8] sm:$0xff]
    %v24 = vld [vmem:[%s2] sm:$0x1]
    %v26 = vlaneseq
    %v27 = vshrl.u32 %v26, 7
    %v28 = vsub.s32 0, %v27
    %v29 = vrot.slane %v24, %v28
    %vm31 = vcmask 130048
    %v33 = vsel %vm31, %v21, 0
    %35 = vmatprep.subr.mxu0 0.0
    %36 = vmatpush1.msra.mxu0 %v22
    %37 = vmatprep.subr.mxu0 0.0
    %38 = vmatpush1.msra.mxu0 %v23
    %39 = vmatprep.subr.mxu0 0.0
    %40 = vmatpush1.msra.mxu0 0.0
    %41 = vmatprep.subr.mxu0 0.0
    %42 = vmatpush1.msra.mxu0 0.0
    %43 = vmatprep.subr.mxu0 0.0
    %44 = vmatpush1.msra.mxu0 0.0
    %45 = vmatprep.subr.mxu0 0.0
    %46 = vmatpush1.msra.mxu0 0.0
    %47 = vmatprep.subr.mxu0 0.0
    %48 = vmatpush1.msra.mxu0 0.0
    %49 = vmatprep.subr.mxu0 0.0
    %50 = vmatpush1.msra.mxu0 0.0
    %51 = vmatprep.subr.mxu0 0.0
    %52 = vmatpush1.msra.mxu0 0.0
    %53 = vmatprep.subr.mxu0 0.0
    %54 = vmatpush1.msra.mxu0 0.0
    %55 = vmatprep.subr.mxu0 0.0
    %56 = vmatpush1.msra.mxu0 0.0
    %57 = vmatprep.subr.mxu0 0.0
    %58 = vmatpush1.msra.mxu0 0.0
    %59 = vmatprep.subr.mxu0 0.0
    %60 = vmatpush1.msra.mxu0 0.0
    %61 = vmatprep.subr.mxu0 0.0
    %62 = vmatpush1.msra.mxu0 0.0
    %63 = vmatprep.subr.mxu0 0.0
    %64 = vmatpush1.msra.mxu0 0.0
    %65 = vmatprep.subr.mxu0 0.0
    %66 = vmatpush1.msra.mxu0 0.0
    %67 = vmatprep.subr.mxu0 0.0
    %68 = vmatpush1.msra.mxu0 0.0
    %69 = vmatprep.subr.mxu0 0.0
    %70 = vmatpush1.msra.mxu0 0.0
    %71 = vmatprep.subr.mxu0 0.0
    %72 = vmatpush1.msra.mxu0 0.0
    %73 = vmatprep.subr.mxu0 0.0
    %74 = vmatpush1.msra.mxu0 0.0
    %75 = vmatprep.subr.mxu0 0.0
    %76 = vmatpush1.msra.mxu0 0.0
    %77 = vmatprep.subr.mxu0 0.0
    %78 = vmatpush1.msra.mxu0 0.0
    %79 = vmatprep.subr.mxu0 0.0
    %80 = vmatpush1.msra.mxu0 0.0
    %81 = vmatprep.subr.mxu0 0.0
    %82 = vmatpush1.msra.mxu0 0.0
    %83 = vmatprep.subr.mxu0 0.0
    %84 = vmatpush1.msra.mxu0 0.0
    %85 = vmatprep.subr.mxu0 0.0
    %86 = vmatpush1.msra.mxu0 0.0
    %87 = vmatprep.subr.mxu0 0.0
    %88 = vmatpush1.msra.mxu0 0.0
    %89 = vmatprep.subr.mxu0 0.0
    %90 = vmatpush1.msra.mxu0 0.0
    %91 = vmatprep.subr.mxu0 0.0
    %92 = vmatpush1.msra.mxu0 0.0
    %93 = vmatprep.subr.mxu0 0.0
    %94 = vmatpush1.msra.mxu0 0.0
    %95 = vmatprep.subr.mxu0 0.0
    %96 = vmatpush1.msra.mxu0 0.0
    %97 = vmatprep.subr.mxu0 0.0
    %98 = vmatpush1.msra.mxu0 0.0
    %99 = vmatprep.mubr.f32.mxu0 0.0
    %100 = vmatmul.mubr.f32.gmra.mrb[0].mxu0 %v33
    %v101 = vpop.f32.mrb[0].mxu0
    %v102 = vadd.f32 %v29, %v101
    %v103 = vpop.f32.mrb[0].mxu0
    %104 = vdwg.mxu0
    %v105 = vmax.f32 %v102, 0.0
    %v106 = vld [vmem:[%s3] sm:$0xff]
    %v107 = vld [vmem:[%s3 + $0x8] sm:$0xff]
    %v108 = vld [vmem:[%s3 + $0x10] sm:$0xff]
    %v109 = vld [vmem:[%s3 + $0x18] sm:$0xff]
    %v110 = vld [vmem:[%s3 + $0x20] sm:$0xff]
    %v111 = vld [vmem:[%s3 + $0x28] sm:$0xff]
    %v112 = vld [vmem:[%s3 + $0x30] sm:$0xff]
    %v113 = vld [vmem:[%s3 + $0x38] sm:$0xff]
    %v114 = vld [vmem:[%s3 + $0x40] sm:$0xff]
    %v115 = vld [vmem:[%s3 + $0x48] sm:$0xff]
    %v116 = vld [vmem:[%s3 + $0x50] sm:$0xff]
    %v117 = vld [vmem:[%s3 + $0x58] sm:$0xff]
    %v118 = vld [vmem:[%s3 + $0x60] sm:$0xff]
    %v119 = vld [vmem:[%s3 + $0x68] sm:$0xff]
    %v120 = vld [vmem:[%s3 + $0x70] sm:$0xff]
    %v121 = vld [vmem:[%s3 + $0x78] sm:$0xff]
    %v122 = vld [vmem:[%s4] sm:$0x1]
    %v124 = vlaneseq
    %v125 = vshrl.u32 %v124, 7
    %v126 = vsub.s32 0, %v125
    %v127 = vrot.slane %v122, %v126
    %129 = vmatprep.subr.mxu0 0.0
    %130 = vmatpush1.msra.mxu0 %v106
    %131 = vmatprep.subr.mxu0 0.0
    %132 = vmatpush1.msra.mxu0 %v107
    %133 = vmatprep.subr.mxu0 0.0
    %134 = vmatpush1.msra.mxu0 %v108
    %135 = vmatprep.subr.mxu0 0.0
    %136 = vmatpush1.msra.mxu0 %v109
    %137 = vmatprep.subr.mxu0 0.0
    %138 = vmatpush1.msra.mxu0 %v110
    %139 = vmatprep.subr.mxu0 0.0
    %140 = vmatpush1.msra.mxu0 %v111
    %141 = vmatprep.subr.mxu0 0.0
    %142 = vmatpush1.msra.mxu0 %v112
    %143 = vmatprep.subr.mxu0 0.0
    %144 = vmatpush1.msra.mxu0 %v113
    %145 = vmatprep.subr.mxu0 0.0
    %146 = vmatpush1.msra.mxu0 %v114
    %147 = vmatprep.subr.mxu0 0.0
    %148 = vmatpush1.msra.mxu0 %v115
    %149 = vmatprep.subr.mxu0 0.0
    %150 = vmatpush1.msra.mxu0 %v116
    %151 = vmatprep.subr.mxu0 0.0
    %152 = vmatpush1.msra.mxu0 %v117
    %153 = vmatprep.subr.mxu0 0.0
    %154 = vmatpush1.msra.mxu0 %v118
    %155 = vmatprep.subr.mxu0 0.0
    %156 = vmatpush1.msra.mxu0 %v119
    %157 = vmatprep.subr.mxu0 0.0
    %158 = vmatpush1.msra.mxu0 %v120
    %159 = vmatprep.subr.mxu0 0.0
    %160 = vmatpush1.msra.mxu0 %v121
    %161 = vmatprep.subr.mxu0 0.0
    %162 = vmatpush1.msra.mxu0 0.0
    %163 = vmatprep.subr.mxu0 0.0
    %164 = vmatpush1.msra.mxu0 0.0
    %165 = vmatprep.subr.mxu0 0.0
    %166 = vmatpush1.msra.mxu0 0.0
    %167 = vmatprep.subr.mxu0 0.0
    %168 = vmatpush1.msra.mxu0 0.0
    %169 = vmatprep.subr.mxu0 0.0
    %170 = vmatpush1.msra.mxu0 0.0
    %171 = vmatprep.subr.mxu0 0.0
    %172 = vmatpush1.msra.mxu0 0.0
    %173 = vmatprep.subr.mxu0 0.0
    %174 = vmatpush1.msra.mxu0 0.0
    %175 = vmatprep.subr.mxu0 0.0
    %176 = vmatpush1.msra.mxu0 0.0
    %177 = vmatprep.subr.mxu0 0.0
    %178 = vmatpush1.msra.mxu0 0.0
    %179 = vmatprep.subr.mxu0 0.0
    %180 = vmatpush1.msra.mxu0 0.0
    %181 = vmatprep.subr.mxu0 0.0
    %182 = vmatpush1.msra.mxu0 0.0
    %183 = vmatprep.subr.mxu0 0.0
    %184 = vmatpush1.msra.mxu0 0.0
    %185 = vmatprep.subr.mxu0 0.0
    %186 = vmatpush1.msra.mxu0 0.0
    %187 = vmatprep.subr.mxu0 0.0
    %188 = vmatpush1.msra.mxu0 0.0
    %189 = vmatprep.subr.mxu0 0.0
    %190 = vmatpush1.msra.mxu0 0.0
    %191 = vmatprep.subr.mxu0 0.0
    %192 = vmatpush1.msra.mxu0 0.0
    %193 = vmatprep.mubr.f32.mxu0 0.0
    %194 = vmatmul.mubr.f32.gmra.mrb[0].mxu0 %v105
    %v195 = vpop.f32.mrb[0].mxu0
    %v196 = vadd.f32 %v127, %v195
    %v197 = vpop.f32.mrb[0].mxu0
    %198 = vdwg.mxu0
    %vm199 = vcmask 64512
    %200 = vst.msk [vmem:[#allocation2] sm:$0xff] %vm199, %v196
    // Predicated region
    $region22: #{policy_net_forward.1} parent=1 // pred_check
      _
    $region23: #{policy_net_forward.1} parent=1 // pred_check_branch
      %202 = sbr.rel (0) target = $region25
    $region24: #{policy_net_forward.1} parent=1 // pred_region
      %s204 = ssub.s32 128, 128
      %205 = vsyncadd [#allocation3], %s204
      %s207 = sshll.u32 [#allocation2], 4
      %s208 = int_to_ptr.vmem [resolvable:$true] %s207
      %210 = dma.vmem_to_hbm [thread:$0]  %s208, 128, %s5, [#allocation3]
    $region25: #{policy_net_forward.1} parent=1 // pred_fallthru
      _
    // Predicated region
    $region26: #{policy_net_forward.1} parent=1 // pred_check
      _
    $region27: #{policy_net_forward.1} parent=1 // pred_check_branch
      %212 = sbr.rel (0) target = $region29
    $region28: #{policy_net_forward.1} parent=1 // pred_region
      %213 = dma.done [#allocation3], 128
    $region29: #{policy_net_forward.1} parent=1 // pred_fallthru
      _
    %214 = vsyncpa [#allocation3], 1

</llo_original>
